<compile_context>
chip_gen: v6e
topology: v6e:2x2x1
jax: 0.10.0
libtpu: 0.0.40
codegen_flags: <defaults>
</compile_context>

<pallas_src>
import functools

import jax
import jax.numpy as jnp
from jax.experimental import pallas as pl
from jax.experimental.pallas import tpu as pltpu


# ------------------------------- Pallas kernel ------------------------------
def _df_output_reshape_kernel(df_order, x_ref, o_ref):
    """Pure-copy permutation (b, t, f, o, c) -> (b, o, t, f, c).

    x_ref : (1, T_blk, F, O*2)      dense input tile for one (batch, time-block)
    o_ref : (1, O, T_blk, F, 2)     all-taps output tile for the same block
    """
    for o in range(df_order):                      # small static unroll (df_order)
        # Static lane slice of the resident tile -> exact, dtype/NaN preserving.
        o_ref[0, o, :, :, :] = x_ref[0, :, :, 2 * o: 2 * o + 2]


# ------------------------------ wrapper / glue -------------------------------
def _pick_t_block(t, f, df_order, itemsize, batch, vmem_budget_bytes):
    """Largest time tile that (a) fits the VMEM budget including the (8,128)
    lane padding of the 2-lane / (O*2)-lane tiles and double buffering,
    (b) divides T exactly, (c) leaves >= 2 grid steps when batch == 1."""
    sub_pad = -(-f // 8) * 8                       # sublane padding of F
    lane_pad = 128                                 # minor dims pad to 128 lanes
    # (input tile + O output slabs), x2 for Pallas double-buffering.
    bytes_per_row = 2 * (1 + df_order) * sub_pad * lane_pad * itemsize
    cap = max(1, int(vmem_budget_bytes // bytes_per_row))
    cap = min(cap, t)
    if batch == 1 and t > 1:
        cap = min(cap, -(-t // 2))                 # keep >= 2 steps for megacore
    for tb in range(cap, 0, -1):                   # largest exact divisor of T
        if t % tb == 0:
            return tb
    return 1


def df_output_reshape_mf(coefs, df_order, df_bins, *, t_block=None,
                         vmem_budget_bytes=16 * 1024 * 1024):
    """Pallas equivalent of DfOutputReshapeMF.forward (zero-FLOP permutation)."""
    b, t, f, o2 = coefs.shape
    assert o2 == 2 * df_order and f == df_bins, (coefs.shape, df_order, df_bins)
    dtype = coefs.dtype

    if t_block is None:
        t_block = _pick_t_block(t, f, df_order, jnp.dtype(dtype).itemsize,
                                b, vmem_budget_bytes)
    n_t = pl.cdiv(t, t_block)

    out = pl.pallas_call(
        functools.partial(_df_output_reshape_kernel, df_order),
        grid=(b, n_t),
        in_specs=[
            # Dense, contiguous HBM read: full (F, O*2) minor dims per tile.
            pl.BlockSpec((1, t_block, f, o2), lambda bi, ti: (bi, ti, 0, 0)),
        ],
        # Dense, contiguous HBM write per tap: full (F, 2) minor dims, all taps
        # of the same time block written by one grid step.
        out_specs=pl.BlockSpec((1, df_order, t_block, f, 2),
                               lambda bi, ti: (bi, 0, ti, 0, 0)),
        out_shape=jax.ShapeDtypeStruct((b, df_order, t, f, 2), dtype),
        compiler_params=pltpu.CompilerParams(
            dimension_semantics=("parallel", "parallel"),   # megacore friendly
            vmem_limit_bytes=32 * 1024 * 1024),
    )(coefs)
    return out


# ----------------------------------- main ------------------------------------
if __name__ == "__main__":
    B, T = 2, 8
    DF_ORDER, DF_BINS = 5, 16                # input (B, T, F, O*2) = (2, 8, 16, 10)

    key = jax.random.PRNGKey(0)
    coefs = jax.random.normal(key, (B, T, DF_BINS, 2 * DF_ORDER), jnp.float32)
    # A true permute must pass non-finite values through untouched
    # (the old selection-matmul corrupted them) -- inject some to prove it.
    coefs = coefs.at[0, 0, 0, 0].set(jnp.inf)
    coefs = coefs.at[1, 3, 5, 7].set(jnp.nan)

    fwd = jax.jit(functools.partial(df_output_reshape_mf,
                                    df_order=DF_ORDER, df_bins=DF_BINS))
    out = jax.block_until_ready(fwd(coefs))

    # Pure-JAX reference of the torch module (unflatten + permute).
    ref = jnp.transpose(coefs.reshape(B, T, DF_BINS, DF_ORDER, 2),
                        (0, 3, 1, 2, 4))

    assert out.shape == (B, DF_ORDER, T, DF_BINS, 2), out.shape
    assert out.dtype == coefs.dtype, out.dtype
    # Bit-exact equality, including inf/NaN passthrough.
    assert bool(jnp.array_equal(out, ref, equal_nan=True))

    # dtype preservation (the torch module keeps the input dtype).
    coefs_bf16 = coefs.astype(jnp.bfloat16)
    out_bf16 = jax.block_until_ready(
        jax.jit(functools.partial(df_output_reshape_mf,
                                  df_order=DF_ORDER,
                                  df_bins=DF_BINS))(coefs_bf16))
    ref_bf16 = jnp.transpose(coefs_bf16.reshape(B, T, DF_BINS, DF_ORDER, 2),
                             (0, 3, 1, 2, 4))
    assert out_bf16.dtype == jnp.bfloat16, out_bf16.dtype
    assert bool(jnp.array_equal(out_bf16, ref_bf16, equal_nan=True))

    print("KERNEL_OK")
</pallas_src>

<mosaic_0001>
module attributes {stable_mosaic.version = 11 : i64} {
  func.func @_df_output_reshape_kernel(%arg0: i32, %arg1: i32, %arg2: memref<1x8x16x10xf32, #tpu.memory_space<vmem>>, %arg3: memref<1x5x8x16x2xf32, #tpu.memory_space<vmem>>) attributes {dimension_semantics = [#tpu.dimension_semantics<parallel>, #tpu.dimension_semantics<parallel>], iteration_bounds = array<i64: 2, 1>, scalar_prefetch = 0 : i64, scratch_operands = 0 : i64, tpu.core_type = #tpu.core_type<tc>, window_params = [{transform_indices = @transform_0, window_bounds = array<i64: 1, 8, 16, 10>}, {transform_indices = @transform_1, window_bounds = array<i64: 1, 5, 8, 16, 2>}]} {
    %c0 = arith.constant 0 : index
    %c0_0 = arith.constant 0 : index
    %c0_1 = arith.constant 0 : index
    %c0_2 = arith.constant 0 : index
    %0 = vector.load %arg2[%c0, %c0_0, %c0_1, %c0_2] : memref<1x8x16x10xf32, #tpu.memory_space<vmem>>, vector<1x8x16x2xf32>
    %1 = vector.shape_cast %0 : vector<1x8x16x2xf32> to vector<8x16x2xf32>
    %c0_3 = arith.constant 0 : index
    %c0_4 = arith.constant 0 : index
    %c0_5 = arith.constant 0 : index
    %c0_6 = arith.constant 0 : index
    %c0_7 = arith.constant 0 : index
    %2 = vector.load %arg3[%c0_3, %c0_4, %c0_5, %c0_6, %c0_7] : memref<1x5x8x16x2xf32, #tpu.memory_space<vmem>>, vector<1x1x8x16x2xf32>
    %3 = vector.shape_cast %2 : vector<1x1x8x16x2xf32> to vector<8x16x2xf32>
    %4 = vector.shape_cast %1 : vector<8x16x2xf32> to vector<1x1x8x16x2xf32>
    tpu.vector_store %arg3[%c0_3, %c0_4, %c0_5, %c0_6, %c0_7], %4 {strides = array<i32>} : memref<1x5x8x16x2xf32, #tpu.memory_space<vmem>>, vector<1x1x8x16x2xf32>,
    %c0_8 = arith.constant 0 : index
    %c0_9 = arith.constant 0 : index
    %c0_10 = arith.constant 0 : index
    %c2 = arith.constant 2 : index
    %5 = vector.load %arg2[%c0_8, %c0_9, %c0_10, %c2] : memref<1x8x16x10xf32, #tpu.memory_space<vmem>>, vector<1x8x16x2xf32>
    %6 = vector.shape_cast %5 : vector<1x8x16x2xf32> to vector<8x16x2xf32>
    %c0_11 = arith.constant 0 : index
    %c1 = arith.constant 1 : index
    %c0_12 = arith.constant 0 : index
    %c0_13 = arith.constant 0 : index
    %c0_14 = arith.constant 0 : index
    %7 = vector.load %arg3[%c0_11, %c1, %c0_12, %c0_13, %c0_14] : memref<1x5x8x16x2xf32, #tpu.memory_space<vmem>>, vector<1x1x8x16x2xf32>
    %8 = vector.shape_cast %7 : vector<1x1x8x16x2xf32> to vector<8x16x2xf32>
    %9 = vector.shape_cast %6 : vector<8x16x2xf32> to vector<1x1x8x16x2xf32>
    tpu.vector_store %arg3[%c0_11, %c1, %c0_12, %c0_13, %c0_14], %9 {strides = array<i32>} : memref<1x5x8x16x2xf32, #tpu.memory_space<vmem>>, vector<1x1x8x16x2xf32>,
    %c0_15 = arith.constant 0 : index
    %c0_16 = arith.constant 0 : index
    %c0_17 = arith.constant 0 : index
    %c4 = arith.constant 4 : index
    %10 = vector.load %arg2[%c0_15, %c0_16, %c0_17, %c4] : memref<1x8x16x10xf32, #tpu.memory_space<vmem>>, vector<1x8x16x2xf32>
    %11 = vector.shape_cast %10 : vector<1x8x16x2xf32> to vector<8x16x2xf32>
    %c0_18 = arith.constant 0 : index
    %c2_19 = arith.constant 2 : index
    %c0_20 = arith.constant 0 : index
    %c0_21 = arith.constant 0 : index
    %c0_22 = arith.constant 0 : index
    %12 = vector.load %arg3[%c0_18, %c2_19, %c0_20, %c0_21, %c0_22] : memref<1x5x8x16x2xf32, #tpu.memory_space<vmem>>, vector<1x1x8x16x2xf32>
    %13 = vector.shape_cast %12 : vector<1x1x8x16x2xf32> to vector<8x16x2xf32>
    %14 = vector.shape_cast %11 : vector<8x16x2xf32> to vector<1x1x8x16x2xf32>
    tpu.vector_store %arg3[%c0_18, %c2_19, %c0_20, %c0_21, %c0_22], %14 {strides = array<i32>} : memref<1x5x8x16x2xf32, #tpu.memory_space<vmem>>, vector<1x1x8x16x2xf32>,
    %c0_23 = arith.constant 0 : index
    %c0_24 = arith.constant 0 : index
    %c0_25 = arith.constant 0 : index
    %c6 = arith.constant 6 : index
    %15 = vector.load %arg2[%c0_23, %c0_24, %c0_25, %c6] : memref<1x8x16x10xf32, #tpu.memory_space<vmem>>, vector<1x8x16x2xf32>
    %16 = vector.shape_cast %15 : vector<1x8x16x2xf32> to vector<8x16x2xf32>
    %c0_26 = arith.constant 0 : index
    %c3 = arith.constant 3 : index
    %c0_27 = arith.constant 0 : index
    %c0_28 = arith.constant 0 : index
    %c0_29 = arith.constant 0 : index
    %17 = vector.load %arg3[%c0_26, %c3, %c0_27, %c0_28, %c0_29] : memref<1x5x8x16x2xf32, #tpu.memory_space<vmem>>, vector<1x1x8x16x2xf32>
    %18 = vector.shape_cast %17 : vector<1x1x8x16x2xf32> to vector<8x16x2xf32>
    %19 = vector.shape_cast %16 : vector<8x16x2xf32> to vector<1x1x8x16x2xf32>
    tpu.vector_store %arg3[%c0_26, %c3, %c0_27, %c0_28, %c0_29], %19 {strides = array<i32>} : memref<1x5x8x16x2xf32, #tpu.memory_space<vmem>>, vector<1x1x8x16x2xf32>,
    %c0_30 = arith.constant 0 : index
    %c0_31 = arith.constant 0 : index
    %c0_32 = arith.constant 0 : index
    %c8 = arith.constant 8 : index
    %20 = vector.load %arg2[%c0_30, %c0_31, %c0_32, %c8] : memref<1x8x16x10xf32, #tpu.memory_space<vmem>>, vector<1x8x16x2xf32>
    %21 = vector.shape_cast %20 : vector<1x8x16x2xf32> to vector<8x16x2xf32>
    %c0_33 = arith.constant 0 : index
    %c4_34 = arith.constant 4 : index
    %c0_35 = arith.constant 0 : index
    %c0_36 = arith.constant 0 : index
    %c0_37 = arith.constant 0 : index
    %22 = vector.load %arg3[%c0_33, %c4_34, %c0_35, %c0_36, %c0_37] : memref<1x5x8x16x2xf32, #tpu.memory_space<vmem>>, vector<1x1x8x16x2xf32>
    %23 = vector.shape_cast %22 : vector<1x1x8x16x2xf32> to vector<8x16x2xf32>
    %24 = vector.shape_cast %21 : vector<8x16x2xf32> to vector<1x1x8x16x2xf32>
    tpu.vector_store %arg3[%c0_33, %c4_34, %c0_35, %c0_36, %c0_37], %24 {strides = array<i32>} : memref<1x5x8x16x2xf32, #tpu.memory_space<vmem>>, vector<1x1x8x16x2xf32>,
    return
  }
  func.func @transform_0(%arg0: i32, %arg1: i32) -> (i32, i32, i32, i32) {
    %c0_i32 = arith.constant 0 : i32
    %c0_i32_0 = arith.constant 0 : i32
    %c0_i32_1 = arith.constant 0 : i32
    return %arg0, %arg1, %c0_i32, %c0_i32_0 : i32, i32, i32, i32
  }
  func.func @transform_1(%arg0: i32, %arg1: i32) -> (i32, i32, i32, i32, i32) {
    %c0_i32 = arith.constant 0 : i32
    %c0_i32_0 = arith.constant 0 : i32
    %c0_i32_1 = arith.constant 0 : i32
    %c0_i32_2 = arith.constant 0 : i32
    return %arg0, %c0_i32, %arg1, %c0_i32_0, %c0_i32_1 : i32, i32, i32, i32, i32
  }
}

</mosaic_0001>

<llo_original>
// kernel: df_output_reshape_mf.1
$region0: #{df_output_reshape_mf.1}
  #allocation0 [shape = 'u32[]', space=smem, size = 0x4, offset = 0x4, fixed_abs, tag = 'smem constant byte address 0x4 - core index']
  #allocation1 [shape = 'u32[144,128]{1,0:T(1,128)}', space=vmem, size = 0x12000, scoped, tag = 'internal scratch']
  %s0 = inlined_call_operand.vmem [shape: f32[2,8,16,10], index: 0, kind: input, shape index: {}]
  %s1 = inlined_call_operand.vmem [shape: f32[2,5,8,16,2], index: 1, kind: output, shape index: {}]
  %s2 = sld [smem:[#allocation0]]
  $region37: #{df_output_reshape_mf.1} parent=0
    _
  %s4 = ssub.s32 1, %s2
  %s5 = scalar_select 0, %s4, %s2
  loop: start=0, step=1, limit=4
  $region2: #{df_output_reshape_mf.1} parent=0 // loop_pre_header
    _
  $region3: #{df_output_reshape_mf.1} parent=0 // loop_header
    %s7 = sphi 0, %s11
    %p8 = scmp.ge.s32.totalorder %s7, 4
    %s14 = sphi 0, %s26
    %s15 = sphi 0, %s22
    %s16 = sphi 0, %s14
    %s17 = sphi 0, %s15
    %s18 = sphi 0, %s16
    %s19 = sphi 0, %s17
    %s31 = sphi 0, %s33
    %s34 = sphi 0, %s31
    %s35 = sphi 0, %s34
    %s51 = sphi 0, %s35
    %s59 = sphi 0, %s61
    %s62 = sphi 0, %s59
    %s63 = sphi 0, %s62
    %s79 = sphi 0, %s63
  $region4: #{df_output_reshape_mf.1} parent=0 // loop_header_branch
    %10 = sbr.rel (%p8) target = $region8
  $region5: #{df_output_reshape_mf.1} parent=0 // loop_body
    %s12 = ssub.s32 %s7, 1
    %s13 = ssub.s32 %s7, 2
    %s20 = sadd.s32 1, %s15
    %p21 = scmp.ge.s32.totalorder %s20, 1
    %s22 = scalar_select %p21, 0, %s20
    %s23 = sadd.s32 1, %s14
    %s24 = scalar_select %p21, %s23, %s14
    %p25 = scmp.ge.s32.totalorder %s24, 2
    %s26 = scalar_select %p25, 0, %s24
    %s27 = ssub.s32 %s14, %s26
    %s28 = ssub.s32 %s15, %s22
    %s29 = sor.u32 %s27, %s28
    %p30 = scmp.eq.s32.totalorder %s29, 0
    %s32 = sadd.s32 %s31, 1
    %s33 = scalar_select %p30, %s31, %s32
    %p36 = pneg %p30
    %p37 = scmp.eq.s32.totalorder %s7, 1
    %p38 = por %p36, %p37
    %p39 = scmp.ne.s32.totalorder %s31, %s34
    %p40 = scmp.eq.s32.totalorder %s7, 0
    %p41 = por %p39, %p40
    %p42 = scmp.ne.s32.totalorder %s31, %s34
    %p43 = scmp.eq.s32.totalorder %s12, 1
    %p44 = por %p42, %p43
    %p45 = scmp.ne.s32.totalorder %s34, %s35
    %p46 = scmp.eq.s32.totalorder %s12, 0
    %p47 = por %p45, %p46
    %p48 = scmp.ne.s32.totalorder %s34, %s35
    %p49 = scmp.eq.s32.totalorder %s13, 1
    %p50 = por %p48, %p49
    %p52 = scmp.ne.s32.totalorder %s35, %s51
    %p53 = scmp.eq.s32.totalorder %s13, 0
    %p54 = por %p52, %p53
    %s55 = ssub.s32 %s14, %s26
    %s56 = ssub.s32 %s15, %s22
    %s57 = sor.u32 %s55, %s56
    %p58 = scmp.eq.s32.totalorder %s57, 0
    %s60 = sadd.s32 %s59, 1
    %s61 = scalar_select %p58, %s59, %s60
    %p64 = pneg %p58
    %p65 = scmp.eq.s32.totalorder %s7, 1
    %p66 = por %p64, %p65
    %p67 = scmp.ne.s32.totalorder %s59, %s62
    %p68 = scmp.eq.s32.totalorder %s7, 0
    %p69 = por %p67, %p68
    %p70 = scmp.ne.s32.totalorder %s59, %s62
    %p71 = scmp.eq.s32.totalorder %s12, 1
    %p72 = por %p70, %p71
    %p73 = scmp.ne.s32.totalorder %s62, %s63
    %p74 = scmp.eq.s32.totalorder %s12, 0
    %p75 = por %p73, %p74
    %p76 = scmp.ne.s32.totalorder %s62, %s63
    %p77 = scmp.eq.s32.totalorder %s13, 1
    %p78 = por %p76, %p77
    %p80 = scmp.ne.s32.totalorder %s63, %s79
    %p81 = scmp.eq.s32.totalorder %s13, 0
    %p82 = por %p80, %p81
    %p83 = scmp.le.s32.totalorder 1, %s7
    %p84 = scmp.lt.s32.totalorder %s7, 3
    %p85 = pnand %p83, %p84
    %p86 = pneg %p85
    // Predicated region
    $region9: #{df_output_reshape_mf.1} parent=5 // pred_check
      _
    $region10: #{df_output_reshape_mf.1} parent=5 // pred_check_branch
      %88 = sbr.rel (%p85) target = $region12
    $region11: #{df_output_reshape_mf.1} parent=5 // pred_region
      %s89 = ssub.s32 %s7, 1
    $region12: #{df_output_reshape_mf.1} parent=5 // pred_fallthru
      _
    %p90 = scmp.lt.s32.totalorder %s7, 2
    // Predicated region
    $region13: #{df_output_reshape_mf.1} parent=5 // pred_check
      %p91 = pneg %p90
    $region14: #{df_output_reshape_mf.1} parent=5 // pred_check_branch
      %93 = sbr.rel (%p91) target = $region16
    $region15: #{df_output_reshape_mf.1} parent=5 // pred_region
      // Predicated region
      $region17: #{df_output_reshape_mf.1} parent=15 // pred_check
        %p94 = pneg %p41
      $region18: #{df_output_reshape_mf.1} parent=15 // pred_check_branch
        %96 = sbr.rel (%p94) target = $region20
      $region19: #{df_output_reshape_mf.1} parent=15 // pred_region
        %s97 = smul.u32 8, %s15
        %p98 = scmp.lt.s32.totalorder %s14, 1
        %s99 = scalar_select %p98, %s14, 1
        %p100 = scmp.lt.s32.totalorder %s97, 7
        %s101 = scalar_select %p100, %s97, 7
        %s102 = smul.addr %s101, 2
        %s103 = smul.addr %s99, 16
        %s104 = sadd.s32 %s102, %s103
        %s105 = smul.addr %s104, 8
        %s106 = scalar_lea.vmem %s0, %s105
        %s107 = smul.u32 8, %s15
      $region20: #{df_output_reshape_mf.1} parent=15 // pred_fallthru
        _
    $region16: #{df_output_reshape_mf.1} parent=5 // pred_fallthru
      _
    %p108 = scmp.le.s32.totalorder 1, %s7
    %p109 = scmp.lt.s32.totalorder %s7, 3
    %p110 = pnand %p108, %p109
    %p111 = pneg %p110
    // Predicated region
    $region21: #{df_output_reshape_mf.1} parent=5 // pred_check
      _
    $region22: #{df_output_reshape_mf.1} parent=5 // pred_check_branch
      %113 = sbr.rel (%p110) target = $region24
    $region23: #{df_output_reshape_mf.1} parent=5 // pred_region
      %s114 = ssub.s32 %s7, 1
      %s115 = smul.u32 8, %s17
      %p116 = scmp.lt.s32.totalorder %s16, 1
      %s117 = scalar_select %p116, %s16, 1
      %p118 = scmp.lt.s32.totalorder %s115, 7
      %s119 = scalar_select %p118, %s115, 7
      %s120 = smul.addr %s119, 2
      %s121 = smul.addr %s117, 16
      %s122 = sadd.s32 %s120, %s121
      %s123 = smul.addr %s122, 8
      %s124 = scalar_lea.vmem %s0, %s123
      %p125 = pneg %p47
      %p126 = pneg %p44
      %p127 = pneg %p75
      %p128 = pneg %p72
      %s129 = smul.u32 8, %s17
      %p130 = scmp.lt.s32.totalorder %s16, 1
      %s131 = scalar_select %p130, %s16, 1
      %p132 = scmp.lt.s32.totalorder %s129, 7
      %s133 = scalar_select %p132, %s129, 7
      %s134 = smul.addr %s133, 2
      %s135 = smul.addr %s131, 80
      %s136 = sadd.s32 %s134, %s135
      %s137 = smul.addr %s136, 8
      %s138 = scalar_lea.vmem %s1, %s137
      %s139 = smul.u32 8, %s17
      %p140 = scmp.lt.s32.totalorder %s16, 1
      %s141 = scalar_select %p140, %s16, 1
      %p142 = scmp.lt.s32.totalorder %s139, 7
      %s143 = scalar_select %p142, %s139, 7
      %s144 = smul.addr %s143, 2
      %s145 = smul.addr %s141, 16
      %s146 = sadd.s32 %s144, %s145
      %s147 = smul.addr %s146, 8
      %s148 = scalar_lea.vmem %s0, %s147
      %s149 = smul.u32 8, %s17
      %s150 = smul.u32 8, %s17
      %p151 = scmp.lt.s32.totalorder %s16, 1
      %s152 = scalar_select %p151, %s16, 1
      %p153 = scmp.lt.s32.totalorder %s150, 7
      %s154 = scalar_select %p153, %s150, 7
      %s155 = smul.addr %s154, 2
      %s156 = smul.addr %s152, 80
      %s157 = sadd.s32 %s155, %s156
      %s158 = smul.addr %s157, 8
      %s159 = scalar_lea.vmem %s1, %s158
      %s160 = smul.u32 8, %s17
      %v161 = vld [vmem:[%s148] sm:$0xff]
      %v162 = vld [vmem:[%s148 + $0x8] sm:$0xff]
      %v163 = vld [vmem:[%s148 + $0x10] sm:$0xff]
      %v164 = vld [vmem:[%s148 + $0x18] sm:$0xff]
      %v165 = vld [vmem:[%s148 + $0x20] sm:$0xff]
      %v166 = vld [vmem:[%s148 + $0x28] sm:$0xff]
      %v167 = vld [vmem:[%s148 + $0x30] sm:$0xff]
      %v168 = vld [vmem:[%s148 + $0x38] sm:$0xff]
      %v169 = vld [vmem:[%s148 + $0x40] sm:$0xff]
      %v170 = vld [vmem:[%s148 + $0x48] sm:$0xff]
      %v171 = vld [vmem:[%s148 + $0x50] sm:$0xff]
      %v172 = vld [vmem:[%s148 + $0x58] sm:$0xff]
      %v173 = vld [vmem:[%s148 + $0x60] sm:$0xff]
      %v174 = vld [vmem:[%s148 + $0x68] sm:$0xff]
      %v175 = vld [vmem:[%s148 + $0x70] sm:$0xff]
      %v176 = vld [vmem:[%s148 + $0x78] sm:$0xff]
      %vm177 = vcmask 15360
      %178 = vst.msk [vmem:[%s159] sm:$0xff] %vm177, %v161
      %179 = vst.msk [vmem:[%s159 + $0x8] sm:$0xff] %vm177, %v162
      %180 = vst.msk [vmem:[%s159 + $0x10] sm:$0xff] %vm177, %v163
      %181 = vst.msk [vmem:[%s159 + $0x18] sm:$0xff] %vm177, %v164
      %182 = vst.msk [vmem:[%s159 + $0x20] sm:$0xff] %vm177, %v165
      %183 = vst.msk [vmem:[%s159 + $0x28] sm:$0xff] %vm177, %v166
      %184 = vst.msk [vmem:[%s159 + $0x30] sm:$0xff] %vm177, %v167
      %185 = vst.msk [vmem:[%s159 + $0x38] sm:$0xff] %vm177, %v168
      %186 = vst.msk [vmem:[%s159 + $0x40] sm:$0xff] %vm177, %v169
      %187 = vst.msk [vmem:[%s159 + $0x48] sm:$0xff] %vm177, %v170
      %188 = vst.msk [vmem:[%s159 + $0x50] sm:$0xff] %vm177, %v171
      %189 = vst.msk [vmem:[%s159 + $0x58] sm:$0xff] %vm177, %v172
      %190 = vst.msk [vmem:[%s159 + $0x60] sm:$0xff] %vm177, %v173
      %191 = vst.msk [vmem:[%s159 + $0x68] sm:$0xff] %vm177, %v174
      %192 = vst.msk [vmem:[%s159 + $0x70] sm:$0xff] %vm177, %v175
      %193 = vst.msk [vmem:[%s159 + $0x78] sm:$0xff] %vm177, %v176
      %v194 = vld [vmem:[%s148] sm:$0xff]
      %v195 = vld [vmem:[%s148 + $0x8] sm:$0xff]
      %v196 = vld [vmem:[%s148 + $0x10] sm:$0xff]
      %v197 = vld [vmem:[%s148 + $0x18] sm:$0xff]
      %v198 = vld [vmem:[%s148 + $0x20] sm:$0xff]
      %v199 = vld [vmem:[%s148 + $0x28] sm:$0xff]
      %v200 = vld [vmem:[%s148 + $0x30] sm:$0xff]
      %v201 = vld [vmem:[%s148 + $0x38] sm:$0xff]
      %v202 = vld [vmem:[%s148 + $0x40] sm:$0xff]
      %v203 = vld [vmem:[%s148 + $0x48] sm:$0xff]
      %v204 = vld [vmem:[%s148 + $0x50] sm:$0xff]
      %v205 = vld [vmem:[%s148 + $0x58] sm:$0xff]
      %v206 = vld [vmem:[%s148 + $0x60] sm:$0xff]
      %v207 = vld [vmem:[%s148 + $0x68] sm:$0xff]
      %v208 = vld [vmem:[%s148 + $0x70] sm:$0xff]
      %v209 = vld [vmem:[%s148 + $0x78] sm:$0xff]
      %226 = vrot.lane.b32.xlu0 %v194, 126
      %v227 = vpop.permute.xlu0 %226
      %228 = vrot.lane.b32.xlu0 %v195, 126
      %v229 = vpop.permute.xlu0 %228
      %230 = vrot.lane.b32.xlu0 %v196, 126
      %v231 = vpop.permute.xlu0 %230
      %232 = vrot.lane.b32.xlu0 %v197, 126
      %v233 = vpop.permute.xlu0 %232
      %234 = vrot.lane.b32.xlu0 %v198, 126
      %v235 = vpop.permute.xlu0 %234
      %236 = vrot.lane.b32.xlu0 %v199, 126
      %v237 = vpop.permute.xlu0 %236
      %238 = vrot.lane.b32.xlu0 %v200, 126
      %v239 = vpop.permute.xlu0 %238
      %240 = vrot.lane.b32.xlu0 %v201, 126
      %v241 = vpop.permute.xlu0 %240
      %242 = vrot.lane.b32.xlu0 %v202, 126
      %v243 = vpop.permute.xlu0 %242
      %244 = vrot.lane.b32.xlu0 %v203, 126
      %v245 = vpop.permute.xlu0 %244
      %246 = vrot.lane.b32.xlu0 %v204, 126
      %v247 = vpop.permute.xlu0 %246
      %248 = vrot.lane.b32.xlu0 %v205, 126
      %v249 = vpop.permute.xlu0 %248
      %250 = vrot.lane.b32.xlu0 %v206, 126
      %v251 = vpop.permute.xlu0 %250
      %252 = vrot.lane.b32.xlu0 %v207, 126
      %v253 = vpop.permute.xlu0 %252
      %254 = vrot.lane.b32.xlu0 %v208, 126
      %v255 = vpop.permute.xlu0 %254
      %256 = vrot.lane.b32.xlu0 %v209, 126
      %v257 = vpop.permute.xlu0 %256
      %s274 = scalar_lea.vmem %s159, 128
      %275 = vst.msk [vmem:[%s274] sm:$0xff] %vm177, %v227
      %276 = vst.msk [vmem:[%s274 + $0x8] sm:$0xff] %vm177, %v229
      %277 = vst.msk [vmem:[%s274 + $0x10] sm:$0xff] %vm177, %v231
      %278 = vst.msk [vmem:[%s274 + $0x18] sm:$0xff] %vm177, %v233
      %279 = vst.msk [vmem:[%s274 + $0x20] sm:$0xff] %vm177, %v235
      %280 = vst.msk [vmem:[%s274 + $0x28] sm:$0xff] %vm177, %v237
      %281 = vst.msk [vmem:[%s274 + $0x30] sm:$0xff] %vm177, %v239
      %282 = vst.msk [vmem:[%s274 + $0x38] sm:$0xff] %vm177, %v241
      %283 = vst.msk [vmem:[%s274 + $0x40] sm:$0xff] %vm177, %v243
      %284 = vst.msk [vmem:[%s274 + $0x48] sm:$0xff] %vm177, %v245
      %285 = vst.msk [vmem:[%s274 + $0x50] sm:$0xff] %vm177, %v247
      %286 = vst.msk [vmem:[%s274 + $0x58] sm:$0xff] %vm177, %v249
      %287 = vst.msk [vmem:[%s274 + $0x60] sm:$0xff] %vm177, %v251
      %288 = vst.msk [vmem:[%s274 + $0x68] sm:$0xff] %vm177, %v253
      %289 = vst.msk [vmem:[%s274 + $0x70] sm:$0xff] %vm177, %v255
      %290 = vst.msk [vmem:[%s274 + $0x78] sm:$0xff] %vm177, %v257
      %v291 = vld [vmem:[%s148] sm:$0xff]
      %v292 = vld [vmem:[%s148 + $0x8] sm:$0xff]
      %v293 = vld [vmem:[%s148 + $0x10] sm:$0xff]
      %v294 = vld [vmem:[%s148 + $0x18] sm:$0xff]
      %v295 = vld [vmem:[%s148 + $0x20] sm:$0xff]
      %v296 = vld [vmem:[%s148 + $0x28] sm:$0xff]
      %v297 = vld [vmem:[%s148 + $0x30] sm:$0xff]
      %v298 = vld [vmem:[%s148 + $0x38] sm:$0xff]
      %v299 = vld [vmem:[%s148 + $0x40] sm:$0xff]
      %v300 = vld [vmem:[%s148 + $0x48] sm:$0xff]
      %v301 = vld [vmem:[%s148 + $0x50] sm:$0xff]
      %v302 = vld [vmem:[%s148 + $0x58] sm:$0xff]
      %v303 = vld [vmem:[%s148 + $0x60] sm:$0xff]
      %v304 = vld [vmem:[%s148 + $0x68] sm:$0xff]
      %v305 = vld [vmem:[%s148 + $0x70] sm:$0xff]
      %v306 = vld [vmem:[%s148 + $0x78] sm:$0xff]
      %323 = vrot.lane.b32.xlu0 %v291, 124
      %v324 = vpop.permute.xlu0 %323
      %325 = vrot.lane.b32.xlu0 %v292, 124
      %v326 = vpop.permute.xlu0 %325
      %327 = vrot.lane.b32.xlu0 %v293, 124
      %v328 = vpop.permute.xlu0 %327
      %329 = vrot.lane.b32.xlu0 %v294, 124
      %v330 = vpop.permute.xlu0 %329
      %331 = vrot.lane.b32.xlu0 %v295, 124
      %v332 = vpop.permute.xlu0 %331
      %333 = vrot.lane.b32.xlu0 %v296, 124
      %v334 = vpop.permute.xlu0 %333
      %335 = vrot.lane.b32.xlu0 %v297, 124
      %v336 = vpop.permute.xlu0 %335
      %337 = vrot.lane.b32.xlu0 %v298, 124
      %v338 = vpop.permute.xlu0 %337
      %339 = vrot.lane.b32.xlu0 %v299, 124
      %v340 = vpop.permute.xlu0 %339
      %341 = vrot.lane.b32.xlu0 %v300, 124
      %v342 = vpop.permute.xlu0 %341
      %343 = vrot.lane.b32.xlu0 %v301, 124
      %v344 = vpop.permute.xlu0 %343
      %345 = vrot.lane.b32.xlu0 %v302, 124
      %v346 = vpop.permute.xlu0 %345
      %347 = vrot.lane.b32.xlu0 %v303, 124
      %v348 = vpop.permute.xlu0 %347
      %349 = vrot.lane.b32.xlu0 %v304, 124
      %v350 = vpop.permute.xlu0 %349
      %351 = vrot.lane.b32.xlu0 %v305, 124
      %v352 = vpop.permute.xlu0 %351
      %353 = vrot.lane.b32.xlu0 %v306, 124
      %v354 = vpop.permute.xlu0 %353
      %s371 = scalar_lea.vmem %s159, 256
      %372 = vst.msk [vmem:[%s371] sm:$0xff] %vm177, %v324
      %373 = vst.msk [vmem:[%s371 + $0x8] sm:$0xff] %vm177, %v326
      %374 = vst.msk [vmem:[%s371 + $0x10] sm:$0xff] %vm177, %v328
      %375 = vst.msk [vmem:[%s371 + $0x18] sm:$0xff] %vm177, %v330
      %376 = vst.msk [vmem:[%s371 + $0x20] sm:$0xff] %vm177, %v332
      %377 = vst.msk [vmem:[%s371 + $0x28] sm:$0xff] %vm177, %v334
      %378 = vst.msk [vmem:[%s371 + $0x30] sm:$0xff] %vm177, %v336
      %379 = vst.msk [vmem:[%s371 + $0x38] sm:$0xff] %vm177, %v338
      %380 = vst.msk [vmem:[%s371 + $0x40] sm:$0xff] %vm177, %v340
      %381 = vst.msk [vmem:[%s371 + $0x48] sm:$0xff] %vm177, %v342
      %382 = vst.msk [vmem:[%s371 + $0x50] sm:$0xff] %vm177, %v344
      %383 = vst.msk [vmem:[%s371 + $0x58] sm:$0xff] %vm177, %v346
      %384 = vst.msk [vmem:[%s371 + $0x60] sm:$0xff] %vm177, %v348
      %385 = vst.msk [vmem:[%s371 + $0x68] sm:$0xff] %vm177, %v350
      %386 = vst.msk [vmem:[%s371 + $0x70] sm:$0xff] %vm177, %v352
      %387 = vst.msk [vmem:[%s371 + $0x78] sm:$0xff] %vm177, %v354
      %v388 = vld [vmem:[%s148] sm:$0xff]
      %v389 = vld [vmem:[%s148 + $0x8] sm:$0xff]
      %v390 = vld [vmem:[%s148 + $0x10] sm:$0xff]
      %v391 = vld [vmem:[%s148 + $0x18] sm:$0xff]
      %v392 = vld [vmem:[%s148 + $0x20] sm:$0xff]
      %v393 = vld [vmem:[%s148 + $0x28] sm:$0xff]
      %v394 = vld [vmem:[%s148 + $0x30] sm:$0xff]
      %v395 = vld [vmem:[%s148 + $0x38] sm:$0xff]
      %v396 = vld [vmem:[%s148 + $0x40] sm:$0xff]
      %v397 = vld [vmem:[%s148 + $0x48] sm:$0xff]
      %v398 = vld [vmem:[%s148 + $0x50] sm:$0xff]
      %v399 = vld [vmem:[%s148 + $0x58] sm:$0xff]
      %v400 = vld [vmem:[%s148 + $0x60] sm:$0xff]
      %v401 = vld [vmem:[%s148 + $0x68] sm:$0xff]
      %v402 = vld [vmem:[%s148 + $0x70] sm:$0xff]
      %v403 = vld [vmem:[%s148 + $0x78] sm:$0xff]
      %420 = vrot.lane.b32.xlu0 %v388, 122
      %v421 = vpop.permute.xlu0 %420
      %422 = vrot.lane.b32.xlu0 %v389, 122
      %v423 = vpop.permute.xlu0 %422
      %424 = vrot.lane.b32.xlu0 %v390, 122
      %v425 = vpop.permute.xlu0 %424
      %426 = vrot.lane.b32.xlu0 %v391, 122
      %v427 = vpop.permute.xlu0 %426
      %428 = vrot.lane.b32.xlu0 %v392, 122
      %v429 = vpop.permute.xlu0 %428
      %430 = vrot.lane.b32.xlu0 %v393, 122
      %v431 = vpop.permute.xlu0 %430
      %432 = vrot.lane.b32.xlu0 %v394, 122
      %v433 = vpop.permute.xlu0 %432
      %434 = vrot.lane.b32.xlu0 %v395, 122
      %v435 = vpop.permute.xlu0 %434
      %436 = vrot.lane.b32.xlu0 %v396, 122
      %v437 = vpop.permute.xlu0 %436
      %438 = vrot.lane.b32.xlu0 %v397, 122
      %v439 = vpop.permute.xlu0 %438
      %440 = vrot.lane.b32.xlu0 %v398, 122
      %v441 = vpop.permute.xlu0 %440
      %442 = vrot.lane.b32.xlu0 %v399, 122
      %v443 = vpop.permute.xlu0 %442
      %444 = vrot.lane.b32.xlu0 %v400, 122
      %v445 = vpop.permute.xlu0 %444
      %446 = vrot.lane.b32.xlu0 %v401, 122
      %v447 = vpop.permute.xlu0 %446
      %448 = vrot.lane.b32.xlu0 %v402, 122
      %v449 = vpop.permute.xlu0 %448
      %450 = vrot.lane.b32.xlu0 %v403, 122
      %v451 = vpop.permute.xlu0 %450
      %s468 = scalar_lea.vmem %s159, 384
      %469 = vst.msk [vmem:[%s468] sm:$0xff] %vm177, %v421
      %470 = vst.msk [vmem:[%s468 + $0x8] sm:$0xff] %vm177, %v423
      %471 = vst.msk [vmem:[%s468 + $0x10] sm:$0xff] %vm177, %v425
      %472 = vst.msk [vmem:[%s468 + $0x18] sm:$0xff] %vm177, %v427
      %473 = vst.msk [vmem:[%s468 + $0x20] sm:$0xff] %vm177, %v429
      %474 = vst.msk [vmem:[%s468 + $0x28] sm:$0xff] %vm177, %v431
      %475 = vst.msk [vmem:[%s468 + $0x30] sm:$0xff] %vm177, %v433
      %476 = vst.msk [vmem:[%s468 + $0x38] sm:$0xff] %vm177, %v435
      %477 = vst.msk [vmem:[%s468 + $0x40] sm:$0xff] %vm177, %v437
      %478 = vst.msk [vmem:[%s468 + $0x48] sm:$0xff] %vm177, %v439
      %479 = vst.msk [vmem:[%s468 + $0x50] sm:$0xff] %vm177, %v441
      %480 = vst.msk [vmem:[%s468 + $0x58] sm:$0xff] %vm177, %v443
      %481 = vst.msk [vmem:[%s468 + $0x60] sm:$0xff] %vm177, %v445
      %482 = vst.msk [vmem:[%s468 + $0x68] sm:$0xff] %vm177, %v447
      %483 = vst.msk [vmem:[%s468 + $0x70] sm:$0xff] %vm177, %v449
      %484 = vst.msk [vmem:[%s468 + $0x78] sm:$0xff] %vm177, %v451
      %v485 = vld [vmem:[%s148] sm:$0xff]
      %v486 = vld [vmem:[%s148 + $0x8] sm:$0xff]
      %v487 = vld [vmem:[%s148 + $0x10] sm:$0xff]
      %v488 = vld [vmem:[%s148 + $0x18] sm:$0xff]
      %v489 = vld [vmem:[%s148 + $0x20] sm:$0xff]
      %v490 = vld [vmem:[%s148 + $0x28] sm:$0xff]
      %v491 = vld [vmem:[%s148 + $0x30] sm:$0xff]
      %v492 = vld [vmem:[%s148 + $0x38] sm:$0xff]
      %v493 = vld [vmem:[%s148 + $0x40] sm:$0xff]
      %v494 = vld [vmem:[%s148 + $0x48] sm:$0xff]
      %v495 = vld [vmem:[%s148 + $0x50] sm:$0xff]
      %v496 = vld [vmem:[%s148 + $0x58] sm:$0xff]
      %v497 = vld [vmem:[%s148 + $0x60] sm:$0xff]
      %v498 = vld [vmem:[%s148 + $0x68] sm:$0xff]
      %v499 = vld [vmem:[%s148 + $0x70] sm:$0xff]
      %v500 = vld [vmem:[%s148 + $0x78] sm:$0xff]
      %517 = vrot.lane.b32.xlu0 %v485, 120
      %v518 = vpop.permute.xlu0 %517
      %519 = vrot.lane.b32.xlu0 %v486, 120
      %v520 = vpop.permute.xlu0 %519
      %521 = vrot.lane.b32.xlu0 %v487, 120
      %v522 = vpop.permute.xlu0 %521
      %523 = vrot.lane.b32.xlu0 %v488, 120
      %v524 = vpop.permute.xlu0 %523
      %525 = vrot.lane.b32.xlu0 %v489, 120
      %v526 = vpop.permute.xlu0 %525
      %527 = vrot.lane.b32.xlu0 %v490, 120
      %v528 = vpop.permute.xlu0 %527
      %529 = vrot.lane.b32.xlu0 %v491, 120
      %v530 = vpop.permute.xlu0 %529
      %531 = vrot.lane.b32.xlu0 %v492, 120
      %v532 = vpop.permute.xlu0 %531
      %533 = vrot.lane.b32.xlu0 %v493, 120
      %v534 = vpop.permute.xlu0 %533
      %535 = vrot.lane.b32.xlu0 %v494, 120
      %v536 = vpop.permute.xlu0 %535
      %537 = vrot.lane.b32.xlu0 %v495, 120
      %v538 = vpop.permute.xlu0 %537
      %539 = vrot.lane.b32.xlu0 %v496, 120
      %v540 = vpop.permute.xlu0 %539
      %541 = vrot.lane.b32.xlu0 %v497, 120
      %v542 = vpop.permute.xlu0 %541
      %543 = vrot.lane.b32.xlu0 %v498, 120
      %v544 = vpop.permute.xlu0 %543
      %545 = vrot.lane.b32.xlu0 %v499, 120
      %v546 = vpop.permute.xlu0 %545
      %547 = vrot.lane.b32.xlu0 %v500, 120
      %v548 = vpop.permute.xlu0 %547
      %s565 = scalar_lea.vmem %s159, 512
      %566 = vst.msk [vmem:[%s565] sm:$0xff] %vm177, %v518
      %567 = vst.msk [vmem:[%s565 + $0x8] sm:$0xff] %vm177, %v520
      %568 = vst.msk [vmem:[%s565 + $0x10] sm:$0xff] %vm177, %v522
      %569 = vst.msk [vmem:[%s565 + $0x18] sm:$0xff] %vm177, %v524
      %570 = vst.msk [vmem:[%s565 + $0x20] sm:$0xff] %vm177, %v526
      %571 = vst.msk [vmem:[%s565 + $0x28] sm:$0xff] %vm177, %v528
      %572 = vst.msk [vmem:[%s565 + $0x30] sm:$0xff] %vm177, %v530
      %573 = vst.msk [vmem:[%s565 + $0x38] sm:$0xff] %vm177, %v532
      %574 = vst.msk [vmem:[%s565 + $0x40] sm:$0xff] %vm177, %v534
      %575 = vst.msk [vmem:[%s565 + $0x48] sm:$0xff] %vm177, %v536
      %576 = vst.msk [vmem:[%s565 + $0x50] sm:$0xff] %vm177, %v538
      %577 = vst.msk [vmem:[%s565 + $0x58] sm:$0xff] %vm177, %v540
      %578 = vst.msk [vmem:[%s565 + $0x60] sm:$0xff] %vm177, %v542
      %579 = vst.msk [vmem:[%s565 + $0x68] sm:$0xff] %vm177, %v544
      %580 = vst.msk [vmem:[%s565 + $0x70] sm:$0xff] %vm177, %v546
      %581 = vst.msk [vmem:[%s565 + $0x78] sm:$0xff] %vm177, %v548
      %s582 = smul.u32 8, %s17
      %p583 = scmp.lt.s32.totalorder %s16, 1
      %s584 = scalar_select %p583, %s16, 1
      %p585 = scmp.lt.s32.totalorder %s582, 7
      %s586 = scalar_select %p585, %s582, 7
      %s587 = smul.addr %s586, 2
      %s588 = smul.addr %s584, 80
      %s589 = sadd.s32 %s587, %s588
      %s590 = smul.addr %s589, 8
      %s591 = scalar_lea.vmem %s1, %s590
      // Predicated region
      $region25: #{df_output_reshape_mf.1} parent=23 // pred_check
        %p592 = pneg %p72
      $region26: #{df_output_reshape_mf.1} parent=23 // pred_check_branch
        %594 = sbr.rel (%p592) target = $region28
      $region27: #{df_output_reshape_mf.1} parent=23 // pred_region
        %s595 = smul.u32 8, %s17
      $region28: #{df_output_reshape_mf.1} parent=23 // pred_fallthru
        _
    $region24: #{df_output_reshape_mf.1} parent=5 // pred_fallthru
      _
    %p596 = scmp.le.s32.totalorder 2, %s7
    // Predicated region
    $region29: #{df_output_reshape_mf.1} parent=5 // pred_check
      %p597 = pneg %p596
    $region30: #{df_output_reshape_mf.1} parent=5 // pred_check_branch
      %599 = sbr.rel (%p597) target = $region32
    $region31: #{df_output_reshape_mf.1} parent=5 // pred_region
      %s600 = ssub.s32 %s7, 2
      // Predicated region
      $region33: #{df_output_reshape_mf.1} parent=31 // pred_check
        %p601 = pneg %p78
      $region34: #{df_output_reshape_mf.1} parent=31 // pred_check_branch
        %603 = sbr.rel (%p601) target = $region36
      $region35: #{df_output_reshape_mf.1} parent=31 // pred_region
        %s604 = smul.u32 8, %s19
        %p605 = scmp.lt.s32.totalorder %s18, 1
        %s606 = scalar_select %p605, %s18, 1
        %p607 = scmp.lt.s32.totalorder %s604, 7
        %s608 = scalar_select %p607, %s604, 7
        %s609 = smul.addr %s608, 2
        %s610 = smul.addr %s606, 80
        %s611 = sadd.s32 %s609, %s610
        %s612 = smul.addr %s611, 8
        %s613 = scalar_lea.vmem %s1, %s612
      $region36: #{df_output_reshape_mf.1} parent=31 // pred_fallthru
        _
    $region32: #{df_output_reshape_mf.1} parent=5 // pred_fallthru
      _
  $region6: #{df_output_reshape_mf.1} parent=0 // loop_footer
    %s11 = sadd.s32 1, %s7
  $region7: #{df_output_reshape_mf.1} parent=0 // loop_footer_branch
    %6 = sbr.rel target = $region3
  $region8: #{df_output_reshape_mf.1} parent=0 // loop_exit
    _

</llo_original>
